<compile_context>
chip_gen: v7x
topology: tpu7x:2x2x1
jax: 0.10.0
libtpu: 0.0.40
codegen_flags: <defaults>
</compile_context>

<pallas_src>
import jax
import jax.numpy as jnp
from jax.experimental import pallas as pl
from jax.experimental.pallas import tpu as pltpu


def final_layer_kernel(x_ref, scale1_ref, w_ref, beff_ref, out_ref):
    # ---- LayerNorm (no affine, eps=1e-6), two-pass (centered) variance ----
    x = x_ref[0].astype(jnp.float32)                       # (tq, H)
    mean = jnp.mean(x, axis=-1, keepdims=True)             # (tq, 1)
    xc = x - mean
    var = jnp.mean(xc * xc, axis=-1, keepdims=True)        # (tq, 1)
    x_norm = xc * jax.lax.rsqrt(var + 1e-6)

    # ---- modulate scale only (shift is folded into the bias) ----
    mod = x_norm * scale1_ref[0].astype(jnp.float32)       # (tq, H) * (1, H)

    # ---- final Linear(H -> Dout): bf16 operands, f32 MXU accumulation ----
    out = jnp.dot(mod.astype(w_ref.dtype), w_ref[...],
                  preferred_element_type=jnp.float32)      # (tq, Dout)
    out = out + beff_ref[0].astype(jnp.float32)            # + (1, Dout)
    out_ref[0] = out.astype(out_ref.dtype)


def _choose_tq(B, T, target=256):
    """Fixed-target T tile with a cdiv grid (ragged tail is row-independent).

    Shrinks the tile (staying a multiple of 8) when the parallel grid
    B * cdiv(T, tq) would expose fewer than 4 steps, so the two v7x
    TensorCores both get work.
    """
    tq = T if T <= target else target            # full extent, or 8-divisible
    while B * pl.cdiv(T, tq) < 4 and tq % 16 == 0 and tq > 8:
        tq //= 2
    return tq


def final_layer(x, c, w_ada, b_ada, w_lin, b_lin, *,
                mxu_dtype=jnp.bfloat16, tq_target=256):
    """x: (B, T, H); c: (B, C_emb).  Weights are stored as (in, out), i.e. the
    transpose of the PyTorch nn.Linear weight.  Returns (B, T, Dout)."""
    B, T, H = x.shape
    Dout = w_lin.shape[1]

    # ---- adaLN_modulation hoisted to the wrapper (tiny, MXU-starved) ----
    cf = c.astype(jnp.float32)
    c_silu = (cf * jax.nn.sigmoid(cf)).astype(c.dtype)      # FP32_SiLU semantics
    ada = (c_silu @ w_ada + b_ada).astype(jnp.float32)      # (B, 2H)
    shift = ada[:, :H]                                       # (B, H)
    scale1 = (1.0 + ada[:, H:]).reshape(B, 1, H)             # (B, 1, H) == 1+scale

    # ---- fold shift into an effective per-batch bias (kept in f32) ----
    b_eff = (shift @ w_lin.astype(jnp.float32)
             + b_lin.astype(jnp.float32)).reshape(B, 1, Dout)  # (B, 1, Dout)

    # ---- bf16 weight for the MXU (hoist to param preprocessing if static) ----
    w_mxu = w_lin if w_lin.dtype == mxu_dtype else w_lin.astype(mxu_dtype)

    tq = _choose_tq(B, T, tq_target)
    grid = (B, pl.cdiv(T, tq))

    return pl.pallas_call(
        final_layer_kernel,
        out_shape=jax.ShapeDtypeStruct((B, T, Dout), x.dtype),
        grid_spec=pltpu.PrefetchScalarGridSpec(
            num_scalar_prefetch=0,
            grid=grid,
            in_specs=[
                pl.BlockSpec((1, tq, H), lambda b, t: (b, t, 0)),    # x tile
                pl.BlockSpec((1, 1, H), lambda b, t: (b, 0, 0)),     # 1+scale row
                pl.BlockSpec((H, Dout), lambda b, t: (0, 0)),        # weight (resident)
                pl.BlockSpec((1, 1, Dout), lambda b, t: (b, 0, 0)),  # folded bias row
            ],
            out_specs=pl.BlockSpec((1, tq, Dout), lambda b, t: (b, t, 0)),
        ),
        compiler_params=pltpu.CompilerParams(
            # Both axes independent -> shard across v7x's two TensorCores.
            dimension_semantics=("parallel", "parallel"),
            # Headroom under v7x's 64 MiB/TC VMEM; footprint at tq=256,
            # H=1408 f32 (2x x-tile + ~3 f32 temporaries + bf16 weight) < 8 MB.
            vmem_limit_bytes=48 * 1024 * 1024,
        ),
    )(x, scale1, w_mxu, b_eff)


# ---------------- references (for the self-test only) ----------------

def final_layer_reference_f32(x, c, w_ada, b_ada, w_lin, b_lin):
    """Faithful f32 version of the PyTorch module."""
    cf = c.astype(jnp.float32)
    c_silu = (cf * jax.nn.sigmoid(cf)).astype(c.dtype)
    ada = (c_silu @ w_ada + b_ada).astype(jnp.float32)
    H = x.shape[-1]
    shift, scale = ada[:, :H], ada[:, H:]
    xf = x.astype(jnp.float32)
    mean = jnp.mean(xf, axis=-1, keepdims=True)
    xc = xf - mean
    var = jnp.mean(xc * xc, axis=-1, keepdims=True)
    x_norm = xc * jax.lax.rsqrt(var + 1e-6)
    mod = x_norm * (1.0 + scale[:, None, :]) + shift[:, None, :]
    return (mod @ w_lin.astype(jnp.float32) + b_lin.astype(jnp.float32)
            ).astype(x.dtype)


def final_layer_reference_mxu(x, c, w_ada, b_ada, w_lin, b_lin,
                              mxu_dtype=jnp.bfloat16):
    """Reference applying the same bf16 operand casts / shift-fold as the kernel."""
    cf = c.astype(jnp.float32)
    c_silu = (cf * jax.nn.sigmoid(cf)).astype(c.dtype)
    ada = (c_silu @ w_ada + b_ada).astype(jnp.float32)
    H = x.shape[-1]
    shift, scale = ada[:, :H], ada[:, H:]
    b_eff = shift @ w_lin.astype(jnp.float32) + b_lin.astype(jnp.float32)
    xf = x.astype(jnp.float32)
    mean = jnp.mean(xf, axis=-1, keepdims=True)
    xc = xf - mean
    var = jnp.mean(xc * xc, axis=-1, keepdims=True)
    x_norm = xc * jax.lax.rsqrt(var + 1e-6)
    mod = x_norm * (1.0 + scale[:, None, :])
    out = jnp.einsum("bth,hd->btd", mod.astype(mxu_dtype),
                     w_lin.astype(mxu_dtype),
                     preferred_element_type=jnp.float32) + b_eff[:, None, :]
    return out.astype(x.dtype)


if __name__ == "__main__":
    # FinalLayer config (small, consistent with the module __init__)
    final_hidden_size = 32
    c_emb_size = 16
    patch_size = 2
    out_channels = 4
    Dout = patch_size * patch_size * out_channels   # 16

    B, T = 2, 8

    key = jax.random.PRNGKey(0)
    kx, kc, k1, k2, k3, k4 = jax.random.split(key, 6)

    x = jax.random.normal(kx, (B, T, final_hidden_size), dtype=jnp.float32)
    c = jax.random.normal(kc, (B, c_emb_size), dtype=jnp.float32)

    # Parameters stored as (in, out) == W^T of the PyTorch nn.Linear weight.
    w_ada = 0.05 * jax.random.normal(
        k1, (c_emb_size, 2 * final_hidden_size), dtype=jnp.float32)
    b_ada = 0.01 * jax.random.normal(
        k2, (2 * final_hidden_size,), dtype=jnp.float32)
    w_lin = 0.05 * jax.random.normal(
        k3, (final_hidden_size, Dout), dtype=jnp.float32)
    b_lin = 0.01 * jax.random.normal(k4, (Dout,), dtype=jnp.float32)

    out = final_layer(x, c, w_ada, b_ada, w_lin, b_lin)
    jax.block_until_ready(out)
    assert out.shape == (B, T, Dout)

    # Tight check against a reference with the same bf16 MXU operand casts.
    ref_mxu = final_layer_reference_mxu(x, c, w_ada, b_ada, w_lin, b_lin)
    assert jnp.allclose(out, ref_mxu, atol=2e-3, rtol=2e-3)

    # Module-semantics check (pure f32) with bf16-appropriate tolerance.
    ref_f32 = final_layer_reference_f32(x, c, w_ada, b_ada, w_lin, b_lin)
    assert jnp.allclose(out, ref_f32, atol=3e-2, rtol=3e-2)

    print("KERNEL_OK")
</pallas_src>

<mosaic_0001>
module attributes {stable_mosaic.version = 11 : i64} {
  func.func @final_layer_kernel(%arg0: i32, %arg1: i32, %arg2: memref<1x8x32xf32, #tpu.memory_space<vmem>>, %arg3: memref<1x1x32xf32, #tpu.memory_space<vmem>>, %arg4: memref<32x16xbf16, #tpu.memory_space<vmem>>, %arg5: memref<1x1x16xf32, #tpu.memory_space<vmem>>, %arg6: memref<1x8x16xf32, #tpu.memory_space<vmem>>) attributes {dimension_semantics = [#tpu.dimension_semantics<parallel>, #tpu.dimension_semantics<parallel>], iteration_bounds = array<i64: 2, 1>, scalar_prefetch = 0 : i64, scratch_operands = 0 : i64, tpu.core_type = #tpu.core_type<tc>, window_params = [{transform_indices = @transform_0, window_bounds = array<i64: 1, 8, 32>}, {transform_indices = @transform_1, window_bounds = array<i64: 1, 1, 32>}, {pipeline_mode = #tpu.pipeline_mode<synchronous>, transform_indices = @transform_2, window_bounds = array<i64: 32, 16>}, {transform_indices = @transform_3, window_bounds = array<i64: 1, 1, 16>}, {transform_indices = @transform_4, window_bounds = array<i64: 1, 8, 16>}]} {
    %c0 = arith.constant 0 : index
    %c0_0 = arith.constant 0 : index
    %c0_1 = arith.constant 0 : index
    %0 = vector.load %arg2[%c0, %c0_0, %c0_1] : memref<1x8x32xf32, #tpu.memory_space<vmem>>, vector<1x8x32xf32>
    %1 = vector.shape_cast %0 : vector<1x8x32xf32> to vector<8x32xf32>
    %cst = arith.constant dense<0.000000e+00> : vector<8xf32>
    %2 = vector.multi_reduction <add>, %1, %cst [1] : vector<8x32xf32> to vector<8xf32>
    %3 = vector.shape_cast %2 : vector<8xf32> to vector<8x1xf32>
    %cst_2 = arith.constant 3.200000e+01 : f32
    %4 = vector.broadcast %cst_2 : f32 to vector<8x1xf32>
    %5 = arith.divf %3, %4 : vector<8x1xf32>
    %6 = vector.broadcast %5 : vector<8x1xf32> to vector<8x32xf32>
    %7 = arith.subf %1, %6 : vector<8x32xf32>
    %8 = arith.mulf %7, %7 : vector<8x32xf32>
    %cst_3 = arith.constant dense<0.000000e+00> : vector<8xf32>
    %9 = vector.multi_reduction <add>, %8, %cst_3 [1] : vector<8x32xf32> to vector<8xf32>
    %10 = vector.shape_cast %9 : vector<8xf32> to vector<8x1xf32>
    %cst_4 = arith.constant 3.200000e+01 : f32
    %11 = vector.broadcast %cst_4 : f32 to vector<8x1xf32>
    %12 = arith.divf %10, %11 : vector<8x1xf32>
    %cst_5 = arith.constant 9.99999997E-7 : f32
    %13 = vector.broadcast %cst_5 : f32 to vector<8x1xf32>
    %14 = arith.addf %12, %13 : vector<8x1xf32>
    %15 = math.rsqrt %14 : vector<8x1xf32>
    %16 = vector.broadcast %15 : vector<8x1xf32> to vector<8x32xf32>
    %17 = arith.mulf %7, %16 : vector<8x32xf32>
    %c0_6 = arith.constant 0 : index
    %c0_7 = arith.constant 0 : index
    %c0_8 = arith.constant 0 : index
    %18 = vector.load %arg3[%c0_6, %c0_7, %c0_8] : memref<1x1x32xf32, #tpu.memory_space<vmem>>, vector<1x1x32xf32>
    %19 = vector.shape_cast %18 : vector<1x1x32xf32> to vector<1x32xf32>
    %20 = vector.broadcast %19 : vector<1x32xf32> to vector<8x32xf32>
    %21 = arith.mulf %17, %20 : vector<8x32xf32>
    %22 = arith.truncf %21 : vector<8x32xf32> to vector<8x32xbf16>
    %c0_9 = arith.constant 0 : index
    %c0_10 = arith.constant 0 : index
    %23 = vector.load %arg4[%c0_9, %c0_10] : memref<32x16xbf16, #tpu.memory_space<vmem>>, vector<32x16xbf16>
    %cst_11 = arith.constant dense<0.000000e+00> : vector<8x16xf32>
    %24 = tpu.matmul %22, %23, %cst_11 {dimension_numbers = #tpu.dot_dimension_numbers<[1], [0], [0], [1], [0, 0, 1, 1], [], []>} : vector<8x32xbf16>, vector<32x16xbf16>, vector<8x16xf32> -> vector<8x16xf32>
    %c0_12 = arith.constant 0 : index
    %c0_13 = arith.constant 0 : index
    %c0_14 = arith.constant 0 : index
    %25 = vector.load %arg5[%c0_12, %c0_13, %c0_14] : memref<1x1x16xf32, #tpu.memory_space<vmem>>, vector<1x1x16xf32>
    %26 = vector.shape_cast %25 : vector<1x1x16xf32> to vector<1x16xf32>
    %27 = vector.broadcast %26 : vector<1x16xf32> to vector<8x16xf32>
    %28 = arith.addf %24, %27 : vector<8x16xf32>
    %c0_15 = arith.constant 0 : index
    %c0_16 = arith.constant 0 : index
    %c0_17 = arith.constant 0 : index
    %29 = vector.load %arg6[%c0_15, %c0_16, %c0_17] : memref<1x8x16xf32, #tpu.memory_space<vmem>>, vector<1x8x16xf32>
    %30 = vector.shape_cast %29 : vector<1x8x16xf32> to vector<8x16xf32>
    %31 = vector.shape_cast %28 : vector<8x16xf32> to vector<1x8x16xf32>
    tpu.vector_store %arg6[%c0_15, %c0_16, %c0_17], %31 {strides = array<i32>} : memref<1x8x16xf32, #tpu.memory_space<vmem>>, vector<1x8x16xf32>,
    return
  }
  func.func @transform_0(%arg0: i32, %arg1: i32) -> (i32, i32, i32) {
    %c0_i32 = arith.constant 0 : i32
    %c0_i32_0 = arith.constant 0 : i32
    return %arg0, %arg1, %c0_i32 : i32, i32, i32
  }
  func.func @transform_1(%arg0: i32, %arg1: i32) -> (i32, i32, i32) {
    %c0_i32 = arith.constant 0 : i32
    %c0_i32_0 = arith.constant 0 : i32
    %c0_i32_1 = arith.constant 0 : i32
    return %arg0, %c0_i32, %c0_i32_0 : i32, i32, i32
  }
  func.func @transform_2(%arg0: i32, %arg1: i32) -> (i32, i32) {
    %c0_i32 = arith.constant 0 : i32
    %c0_i32_0 = arith.constant 0 : i32
    %c0_i32_1 = arith.constant 0 : i32
    return %c0_i32, %c0_i32_0 : i32, i32
  }
  func.func @transform_3(%arg0: i32, %arg1: i32) -> (i32, i32, i32) {
    %c0_i32 = arith.constant 0 : i32
    %c0_i32_0 = arith.constant 0 : i32
    %c0_i32_1 = arith.constant 0 : i32
    return %arg0, %c0_i32, %c0_i32_0 : i32, i32, i32
  }
  func.func @transform_4(%arg0: i32, %arg1: i32) -> (i32, i32, i32) {
    %c0_i32 = arith.constant 0 : i32
    %c0_i32_0 = arith.constant 0 : i32
    return %arg0, %arg1, %c0_i32 : i32, i32, i32
  }
}

</mosaic_0001>

<llo_original>
// kernel: tpu_custom_call.1
$region0: #{tpu_custom_call.1}
  #allocation0 [shape = 'u32[]', space=smem, size = 0x4, offset = 0x4, fixed_abs, tag = 'smem constant byte address 0x4 - core index']
  #allocation1 [shape = 'u32[144,128]{1,0:T(1,128)}', space=vmem, size = 0x12000, scoped, tag = 'internal scratch']
  %s0 = inlined_call_operand.vmem [shape: f32[2,8,32], index: 0, kind: input, shape index: {}]
  %s1 = inlined_call_operand.vmem [shape: f32[2,1,32], index: 1, kind: input, shape index: {}]
  %s2 = inlined_call_operand.vmem [shape: bf16[32,16], index: 2, kind: input, shape index: {}]
  %s3 = inlined_call_operand.vmem [shape: f32[2,1,16], index: 3, kind: input, shape index: {}]
  %s4 = inlined_call_operand.hbm [shape: f32[2,8,16], index: 4, kind: output, shape index: {}]
  %s5 = sld [smem:[#allocation0]]
  $region49: #{tpu_custom_call.1} parent=0
    _
  %s7 = ssub.s32 1, %s5
  %s8 = scalar_select 0, %s7, %s5
  $region1: #{tpu_custom_call.1} parent=0
    #allocation2 [shape = 'u8[8192]{0}', space=vmem, size = 0x2000, scoped, tag = 'output window, operand 0']
    #allocation3 [shape = 's32[2]{0}', space=sflag, size = 0x8, scoped, tag = 'scoped memory for tpu_custom_call.1']
    %9 = vsyncpa [#allocation3], 0
    %s10 = scalar_lea.sflag [#allocation3], 1
    %11 = vsyncpa %s10, 0
    loop: start=0, step=1, limit=4
    $region2: #{tpu_custom_call.1} parent=1 // loop_pre_header
      _
    $region3: #{tpu_custom_call.1} parent=1 // loop_header
      %s13 = sphi 0, %s17
      %p14 = scmp.ge.s32.totalorder %s13, 4
      %s20 = sphi 0, %s32
      %s21 = sphi 0, %s28
      %s22 = sphi 0, %s20
      %s23 = sphi 0, %s21
      %s24 = sphi 0, %s22
      %s25 = sphi 0, %s23
      %s37 = sphi 0, %s39
      %s40 = sphi 0, %s37
      %s41 = sphi 0, %s40
      %s57 = sphi 0, %s41
      %s63 = sphi 0, %s65
      %s66 = sphi 0, %s63
      %s67 = sphi 0, %s66
      %s83 = sphi 0, %s67
      %s87 = sphi 0, %s87
      %s89 = sphi 0, %s87
      %s90 = sphi 0, %s89
      %s104 = sphi 0, %s90
      %s110 = sphi 0, %s112
      %s113 = sphi 0, %s110
      %s114 = sphi 0, %s113
      %s130 = sphi 0, %s114
      %s138 = sphi 0, %s140
      %s141 = sphi 0, %s138
      %s142 = sphi 0, %s141
      %s158 = sphi 0, %s142
    $region4: #{tpu_custom_call.1} parent=1 // loop_header_branch
      %16 = sbr.rel (%p14) target = $region8
    $region5: #{tpu_custom_call.1} parent=1 // loop_body
      %s18 = ssub.s32 %s13, 1
      %s19 = ssub.s32 %s13, 2
      %s26 = sadd.s32 1, %s21
      %p27 = scmp.ge.s32.totalorder %s26, 1
      %s28 = scalar_select %p27, 0, %s26
      %s29 = sadd.s32 1, %s20
      %s30 = scalar_select %p27, %s29, %s20
      %p31 = scmp.ge.s32.totalorder %s30, 2
      %s32 = scalar_select %p31, 0, %s30
      %s33 = ssub.s32 %s20, %s32
      %s34 = ssub.s32 %s21, %s28
      %s35 = sor.u32 %s33, %s34
      %p36 = scmp.eq.s32.totalorder %s35, 0
      %s38 = sadd.s32 %s37, 1
      %s39 = scalar_select %p36, %s37, %s38
      %p42 = pneg %p36
      %p43 = scmp.eq.s32.totalorder %s13, 1
      %p44 = por %p42, %p43
      %p45 = scmp.ne.s32.totalorder %s37, %s40
      %p46 = scmp.eq.s32.totalorder %s13, 0
      %p47 = por %p45, %p46
      %p48 = scmp.ne.s32.totalorder %s37, %s40
      %p49 = scmp.eq.s32.totalorder %s18, 1
      %p50 = por %p48, %p49
      %p51 = scmp.ne.s32.totalorder %s40, %s41
      %p52 = scmp.eq.s32.totalorder %s18, 0
      %p53 = por %p51, %p52
      %p54 = scmp.ne.s32.totalorder %s40, %s41
      %p55 = scmp.eq.s32.totalorder %s19, 1
      %p56 = por %p54, %p55
      %p58 = scmp.ne.s32.totalorder %s41, %s57
      %p59 = scmp.eq.s32.totalorder %s19, 0
      %p60 = por %p58, %p59
      %s61 = ssub.s32 %s20, %s32
      %p62 = scmp.eq.s32.totalorder %s61, 0
      %s64 = sadd.s32 %s63, 1
      %s65 = scalar_select %p62, %s63, %s64
      %p68 = pneg %p62
      %p69 = scmp.eq.s32.totalorder %s13, 1
      %p70 = por %p68, %p69
      %p71 = scmp.ne.s32.totalorder %s63, %s66
      %p72 = scmp.eq.s32.totalorder %s13, 0
      %p73 = por %p71, %p72
      %p74 = scmp.ne.s32.totalorder %s63, %s66
      %p75 = scmp.eq.s32.totalorder %s18, 1
      %p76 = por %p74, %p75
      %p77 = scmp.ne.s32.totalorder %s66, %s67
      %p78 = scmp.eq.s32.totalorder %s18, 0
      %p79 = por %p77, %p78
      %p80 = scmp.ne.s32.totalorder %s66, %s67
      %p81 = scmp.eq.s32.totalorder %s19, 1
      %p82 = por %p80, %p81
      %p84 = scmp.ne.s32.totalorder %s67, %s83
      %p85 = scmp.eq.s32.totalorder %s19, 0
      %p86 = por %p84, %p85
      %s88 = sadd.s32 %s87, 1
      %p91 = scmp.eq.s32.totalorder %s13, 1
      %p92 = scmp.ne.s32.totalorder %s87, %s89
      %p93 = scmp.eq.s32.totalorder %s13, 0
      %p94 = por %p92, %p93
      %p95 = scmp.ne.s32.totalorder %s87, %s89
      %p96 = scmp.eq.s32.totalorder %s18, 1
      %p97 = por %p95, %p96
      %p98 = scmp.ne.s32.totalorder %s89, %s90
      %p99 = scmp.eq.s32.totalorder %s18, 0
      %p100 = por %p98, %p99
      %p101 = scmp.ne.s32.totalorder %s89, %s90
      %p102 = scmp.eq.s32.totalorder %s19, 1
      %p103 = por %p101, %p102
      %p105 = scmp.ne.s32.totalorder %s90, %s104
      %p106 = scmp.eq.s32.totalorder %s19, 0
      %p107 = por %p105, %p106
      %s108 = ssub.s32 %s20, %s32
      %p109 = scmp.eq.s32.totalorder %s108, 0
      %s111 = sadd.s32 %s110, 1
      %s112 = scalar_select %p109, %s110, %s111
      %p115 = pneg %p109
      %p116 = scmp.eq.s32.totalorder %s13, 1
      %p117 = por %p115, %p116
      %p118 = scmp.ne.s32.totalorder %s110, %s113
      %p119 = scmp.eq.s32.totalorder %s13, 0
      %p120 = por %p118, %p119
      %p121 = scmp.ne.s32.totalorder %s110, %s113
      %p122 = scmp.eq.s32.totalorder %s18, 1
      %p123 = por %p121, %p122
      %p124 = scmp.ne.s32.totalorder %s113, %s114
      %p125 = scmp.eq.s32.totalorder %s18, 0
      %p126 = por %p124, %p125
      %p127 = scmp.ne.s32.totalorder %s113, %s114
      %p128 = scmp.eq.s32.totalorder %s19, 1
      %p129 = por %p127, %p128
      %p131 = scmp.ne.s32.totalorder %s114, %s130
      %p132 = scmp.eq.s32.totalorder %s19, 0
      %p133 = por %p131, %p132
      %s134 = ssub.s32 %s20, %s32
      %s135 = ssub.s32 %s21, %s28
      %s136 = sor.u32 %s134, %s135
      %p137 = scmp.eq.s32.totalorder %s136, 0
      %s139 = sadd.s32 %s138, 1
      %s140 = scalar_select %p137, %s138, %s139
      %p143 = pneg %p137
      %p144 = scmp.eq.s32.totalorder %s13, 1
      %p145 = por %p143, %p144
      %p146 = scmp.ne.s32.totalorder %s138, %s141
      %p147 = scmp.eq.s32.totalorder %s13, 0
      %p148 = por %p146, %p147
      %p149 = scmp.ne.s32.totalorder %s138, %s141
      %p150 = scmp.eq.s32.totalorder %s18, 1
      %p151 = por %p149, %p150
      %p152 = scmp.ne.s32.totalorder %s141, %s142
      %p153 = scmp.eq.s32.totalorder %s18, 0
      %p154 = por %p152, %p153
      %p155 = scmp.ne.s32.totalorder %s141, %s142
      %p156 = scmp.eq.s32.totalorder %s19, 1
      %p157 = por %p155, %p156
      %p159 = scmp.ne.s32.totalorder %s142, %s158
      %p160 = scmp.eq.s32.totalorder %s19, 0
      %p161 = por %p159, %p160
      %p162 = scmp.le.s32.totalorder 1, %s13
      %p163 = scmp.lt.s32.totalorder %s13, 3
      %p164 = pnand %p162, %p163
      %p165 = pneg %p164
      // Predicated region
      $region9: #{tpu_custom_call.1} parent=5 // pred_check
        _
      $region10: #{tpu_custom_call.1} parent=5 // pred_check_branch
        %167 = sbr.rel (%p164) target = $region12
      $region11: #{tpu_custom_call.1} parent=5 // pred_region
        %s168 = ssub.s32 %s13, 1
        // Predicated region
        $region13: #{tpu_custom_call.1} parent=11 // pred_check
          %p169 = pneg %p100
        $region14: #{tpu_custom_call.1} parent=11 // pred_check_branch
          %171 = sbr.rel (%p169) target = $region16
        $region15: #{tpu_custom_call.1} parent=11 // pred_region
          _
        $region16: #{tpu_custom_call.1} parent=11 // pred_fallthru
          _
      $region12: #{tpu_custom_call.1} parent=5 // pred_fallthru
        _
      %p172 = scmp.lt.s32.totalorder %s13, 2
      // Predicated region
      $region17: #{tpu_custom_call.1} parent=5 // pred_check
        %p173 = pneg %p172
      $region18: #{tpu_custom_call.1} parent=5 // pred_check_branch
        %175 = sbr.rel (%p173) target = $region20
      $region19: #{tpu_custom_call.1} parent=5 // pred_region
        // Predicated region
        $region21: #{tpu_custom_call.1} parent=19 // pred_check
          %p176 = pneg %p47
        $region22: #{tpu_custom_call.1} parent=19 // pred_check_branch
          %178 = sbr.rel (%p176) target = $region24
        $region23: #{tpu_custom_call.1} parent=19 // pred_region
          %p179 = scmp.lt.s32.totalorder %s20, 1
          %s180 = scalar_select %p179, %s20, 1
          %p181 = scmp.lt.s32.totalorder %s21, 0
          %s182 = scalar_select %p181, %s21, 0
          %s183 = sadd.s32 %s182, %s180
          %s184 = smul.addr %s183, 8
          %s185 = scalar_lea.vmem %s0, %s184
        $region24: #{tpu_custom_call.1} parent=19 // pred_fallthru
          _
        // Predicated region
        $region25: #{tpu_custom_call.1} parent=19 // pred_check
          %p186 = pneg %p73
        $region26: #{tpu_custom_call.1} parent=19 // pred_check_branch
          %188 = sbr.rel (%p186) target = $region28
        $region27: #{tpu_custom_call.1} parent=19 // pred_region
          %p189 = scmp.lt.s32.totalorder %s20, 1
          %s190 = scalar_select %p189, %s20, 1
          %s191 = scalar_lea.vmem %s1, %s190
        $region28: #{tpu_custom_call.1} parent=19 // pred_fallthru
          _
        // Predicated region
        $region29: #{tpu_custom_call.1} parent=19 // pred_check
          %p192 = pneg %p120
        $region30: #{tpu_custom_call.1} parent=19 // pred_check_branch
          %194 = sbr.rel (%p192) target = $region32
        $region31: #{tpu_custom_call.1} parent=19 // pred_region
          %p195 = scmp.lt.s32.totalorder %s20, 1
          %s196 = scalar_select %p195, %s20, 1
          %s197 = scalar_lea.vmem %s3, %s196
        $region32: #{tpu_custom_call.1} parent=19 // pred_fallthru
          _
      $region20: #{tpu_custom_call.1} parent=5 // pred_fallthru
        _
      %p198 = scmp.le.s32.totalorder 1, %s13
      %p199 = scmp.lt.s32.totalorder %s13, 3
      %p200 = pnand %p198, %p199
      %p201 = pneg %p200
      // Predicated region
      $region33: #{tpu_custom_call.1} parent=5 // pred_check
        _
      $region34: #{tpu_custom_call.1} parent=5 // pred_check_branch
        %203 = sbr.rel (%p200) target = $region36
      $region35: #{tpu_custom_call.1} parent=5 // pred_region
        %s204 = ssub.s32 %s13, 1
        %p205 = scmp.lt.s32.totalorder %s22, 1
        %s206 = scalar_select %p205, %s22, 1
        %p207 = scmp.lt.s32.totalorder %s23, 0
        %s208 = scalar_select %p207, %s23, 0
        %s209 = sadd.s32 %s208, %s206
        %s210 = smul.addr %s209, 8
        %s211 = scalar_lea.vmem %s0, %s210
        %p212 = pneg %p53
        %p213 = pneg %p50
        %p214 = scmp.lt.s32.totalorder %s22, 1
        %s215 = scalar_select %p214, %s22, 1
        %s216 = scalar_lea.vmem %s1, %s215
        %p217 = pneg %p79
        %p218 = pneg %p76
        %p219 = pneg %p100
        %p220 = pneg %p97
        %p221 = scmp.lt.s32.totalorder %s22, 1
        %s222 = scalar_select %p221, %s22, 1
        %s223 = scalar_lea.vmem %s3, %s222
        %p224 = pneg %p126
        %p225 = pneg %p123
        %p226 = pneg %p154
        %p227 = pneg %p151
        %s228 = sand.u32 %s141, 1
        %s229 = scalar_lea.sflag [#allocation3], %s228
        %s230 = sand.u32 %s141, 1
        %s231 = smul.addr %s230, 8
        %s232 = scalar_lea.vmem [#allocation2], %s231
        %p233 = scmp.lt.s32.totalorder %s22, 1
        %s234 = scalar_select %p233, %s22, 1
        %p235 = scmp.lt.s32.totalorder %s23, 0
        %s236 = scalar_select %p235, %s23, 0
        %s237 = sadd.s32 %s236, %s234
        %s238 = smul.addr %s237, 8
        %s239 = scalar_lea.vmem %s0, %s238
        %p240 = scmp.lt.s32.totalorder %s22, 1
        %s241 = scalar_select %p240, %s22, 1
        %s242 = scalar_lea.vmem %s1, %s241
        %p243 = scmp.lt.s32.totalorder %s22, 1
        %s244 = scalar_select %p243, %s22, 1
        %s245 = scalar_lea.vmem %s3, %s244
        %v247 = vld [vmem:[%s239] sm:$0xff]
        %vm248 = vcmask 261120
        %v249 = vsel %vm248, %v247, 0.0
        %250 = vadd.xlane.f32.xlu0 %v249
        %v251 = vpop.xlane.xlu0 %250
        %v252 = vrcp.pop 32.0
        %v253 = vmul.f32 %v251, %v252
        %v254 = vsub.f32 %v247, %v253
        %v255 = vmul.f32 %v254, %v254
        %v256 = vsel %vm248, %v255, 0.0
        %257 = vadd.xlane.f32.xlu0 %v256
        %v258 = vpop.xlane.xlu0 %257
        %v259 = vmul.f32 %v258, %v252
        %v260 = vadd.f32 %v259, 1e-06
        %v261 = vrsqrt.pop %v260
        %v262 = vmul.f32 %v254, %v261
        %v263 = vld [vmem:[%s242] sm:$0x1]
        %v265 = vlaneseq
        %v266 = vshrl.u32 %v265, 7
        %v267 = vsub.s32 0, %v266
        %v268 = vrot.slane %v263, %v267
        %v270 = vmul.f32 %v262, %v268
        %v271 = vpack.c.bf16 %v270, %v270
        %v272 = vld [vmem:[%s2] sm:$0xf]
        %v273 = vld [vmem:[%s2 + $0x4] sm:$0xf]
        %v274 = vld [vmem:[%s2 + $0x8] sm:$0xf]
        %v275 = vld [vmem:[%s2 + $0xc] sm:$0xf]
        %v276 = vld [vmem:[%s245] sm:$0x1]
        %v278 = vlaneseq
        %v279 = vshrl.u32 %v278, 7
        %v280 = vsub.s32 0, %v279
        %v281 = vrot.slane %v276, %v280
        %v287 = vunpack.c.l.b16 %v272
        %v288 = vunpack.c.l.b16 %v273
        %v289 = vunpack.c.l.b16 %v274
        %v290 = vunpack.c.l.b16 %v275
        %v291 = vpack.c.b16 %v288, %v287
        %v292 = vpack.c.b16 %v290, %v289
        %v296 = vsel %vm248, %v271, 0
        %298 = vmatprep.subr.bf16.mxu0 0
        %299 = vmatpush1.bf16.msra.mxu0 %v291
        %300 = vmatprep.subr.bf16.mxu0 0
        %301 = vmatpush1.bf16.msra.mxu0 %v292
        %302 = vmatprep.subr.bf16.mxu0 0
        %303 = vmatpush1.bf16.msra.mxu0 0
        %304 = vmatprep.subr.bf16.mxu0 0
        %305 = vmatpush1.bf16.msra.mxu0 0
        %306 = vmatprep.subr.bf16.mxu0 0
        %307 = vmatpush1.bf16.msra.mxu0 0
        %308 = vmatprep.subr.bf16.mxu0 0
        %309 = vmatpush1.bf16.msra.mxu0 0
        %310 = vmatprep.subr.bf16.mxu0 0
        %311 = vmatpush1.bf16.msra.mxu0 0
        %312 = vmatprep.subr.bf16.mxu0 0
        %313 = vmatpush1.bf16.msra.mxu0 0
        %314 = vmatprep.subr.bf16.mxu0 0
        %315 = vmatpush1.bf16.msra.mxu0 0
        %316 = vmatprep.subr.bf16.mxu0 0
        %317 = vmatpush1.bf16.msra.mxu0 0
        %318 = vmatprep.subr.bf16.mxu0 0
        %319 = vmatpush1.bf16.msra.mxu0 0
        %320 = vmatprep.subr.bf16.mxu0 0
        %321 = vmatpush1.bf16.msra.mxu0 0
        %322 = vmatprep.subr.bf16.mxu0 0
        %323 = vmatpush1.bf16.msra.mxu0 0
        %324 = vmatprep.subr.bf16.mxu0 0
        %325 = vmatpush1.bf16.msra.mxu0 0
        %326 = vmatprep.subr.bf16.mxu0 0
        %327 = vmatpush1.bf16.msra.mxu0 0
        %328 = vmatprep.subr.bf16.mxu0 0
        %329 = vmatpush1.bf16.msra.mxu0 0
        %330 = vmatprep.mubr.bf16.mxu0 0
        %331 = vmatmul.mubr.bf16.gmra.mrb[0].mxu0 %v296
        %v332 = vpop.f32.mrb[0].mxu0
        %v333 = vadd.f32 %v281, %v332
        %v334 = vpop.f32.mrb[0].mxu0
        %v335 = vpop.f32.mrb[0].mxu0
        %v336 = vpop.f32.mrb[0].mxu0
        %337 = vdwg.mxu0
        %vm338 = vcmask 130048
        %339 = vst.msk [vmem:[%s232] sm:$0xff] %vm338, %v333
        %s340 = sand.u32 %s141, 1
        %s341 = scalar_lea.sflag [#allocation3], %s340
        %s342 = sand.u32 %s141, 1
        %s343 = smul.addr %s342, 8
        %s344 = scalar_lea.vmem [#allocation2], %s343
        // Predicated region
        $region37: #{tpu_custom_call.1} parent=35 // pred_check
          %p345 = pneg %p151
        $region38: #{tpu_custom_call.1} parent=35 // pred_check_branch
          %347 = sbr.rel (%p345) target = $region40
        $region39: #{tpu_custom_call.1} parent=35 // pred_region
          %s349 = ssub.s32 128, 128
          %350 = vsyncadd %s341, %s349
          %s351 = sadd.s32 %s23, %s22
          %s352 = smul.addr %s351, 128
          %s353 = scalar_lea.hbm %s4, %s352
          %s355 = sshll.u32 %s344, 4
          %s356 = int_to_ptr.vmem [resolvable:$true] %s355
          %358 = dma.vmem_to_hbm [thread:$0]  %s356, 128, %s353, %s341
        $region40: #{tpu_custom_call.1} parent=35 // pred_fallthru
          _
      $region36: #{tpu_custom_call.1} parent=5 // pred_fallthru
        _
      %p359 = scmp.le.s32.totalorder 2, %s13
      // Predicated region
      $region41: #{tpu_custom_call.1} parent=5 // pred_check
        %p360 = pneg %p359
      $region42: #{tpu_custom_call.1} parent=5 // pred_check_branch
        %362 = sbr.rel (%p360) target = $region44
      $region43: #{tpu_custom_call.1} parent=5 // pred_region
        %s363 = ssub.s32 %s13, 2
        // Predicated region
        $region45: #{tpu_custom_call.1} parent=43 // pred_check
          %p364 = pneg %p157
        $region46: #{tpu_custom_call.1} parent=43 // pred_check_branch
          %366 = sbr.rel (%p364) target = $region48
        $region47: #{tpu_custom_call.1} parent=43 // pred_region
          %s367 = sand.u32 %s142, 1
          %s368 = scalar_lea.sflag [#allocation3], %s367
          %s369 = sand.u32 %s142, 1
          %s370 = smul.addr %s369, 8
          %s371 = scalar_lea.vmem [#allocation2], %s370
          %372 = dma.done %s368, 128
        $region48: #{tpu_custom_call.1} parent=43 // pred_fallthru
          _
      $region44: #{tpu_custom_call.1} parent=5 // pred_fallthru
        _
    $region6: #{tpu_custom_call.1} parent=1 // loop_footer
      %s17 = sadd.s32 1, %s13
    $region7: #{tpu_custom_call.1} parent=1 // loop_footer_branch
      %12 = sbr.rel target = $region3
    $region8: #{tpu_custom_call.1} parent=1 // loop_exit
      _
    %373 = vsyncpa [#allocation3], 1
    %s374 = scalar_lea.sflag [#allocation3], 1
    %375 = vsyncpa %s374, 1

</llo_original>
